<compile_context>
chip_gen: v7x
topology: tpu7x:2x2x1
jax: 0.10.0
libtpu: 0.0.40
codegen_flags: <defaults>
</compile_context>

<pallas_src>
import math
import functools

import jax
import jax.numpy as jnp
from jax.experimental import pallas as pl
from jax.experimental.pallas import tpu as pltpu


def _round_up(x, m):
    return ((x + m - 1) // m) * m


# ----------------------------------------------------------------------------
# Pallas kernel: all layers fused; one grid step processes a (tm, *) batch tile.
# Weights/biases use constant index_maps -> DMA'd once, VMEM-resident.
# ----------------------------------------------------------------------------
def _mlp_kernel(n_rest, clamp_lo, clamp_hi, *refs):
    # refs = (x_ref, w0_ref, b0_ref, [wr_ref, br_ref,] out_ref)
    x_ref = refs[0]
    w0_ref = refs[1]
    b0_ref = refs[2]
    out_ref = refs[-1]

    h = x_ref[...]  # bf16 (tm, in_dim)  -- un-padded contraction dim
    acc = jnp.dot(h, w0_ref[...], preferred_element_type=jnp.float32) + b0_ref[...]

    if n_rest:
        wr_ref = refs[3]   # bf16 (n_rest, P, P), zero-padded
        br_ref = refs[4]   # f32  (n_rest, 1, P), zero-padded
        for layer in range(n_rest):
            # ReLU after every hidden Linear; feed next MXU matmul in bf16.
            h = jnp.maximum(acc, 0.0).astype(jnp.bfloat16)
            acc = (
                jnp.dot(h, wr_ref[layer], preferred_element_type=jnp.float32)
                + br_ref[layer]
            )

    # Final layer output, clamped to action_range.  Lane-dense (tm, P) store.
    out_ref[...] = jnp.clip(acc, clamp_lo, clamp_hi)


@functools.partial(jax.jit, static_argnames=("action_range", "output_dim", "tm"))
def mlp_pallas(x, w0, b0, wr, br, *, action_range, output_dim, tm=None):
    """x: (B, in_dim) f32.
    w0: bf16 (in_dim, P), b0: f32 (1, P)     -- first layer (K not lane-padded)
    wr: bf16 (L-1, P, P), br: f32 (L-1, 1, P) -- remaining layers (or None)
    Returns f32 (B, output_dim)."""
    B, in_dim = x.shape
    P = w0.shape[1]
    n_rest = 0 if wr is None else wr.shape[0]

    # Batch tile: multiple of 16 (bf16 sublanes), capped at 2048, and sized so
    # the grid has >= 2 even steps when B allows (v7x dual-TC sharding).
    if tm is None:
        tm = min(2048, _round_up(max((B + 1) // 2, 16), 16))
    B_pad = _round_up(B, tm)
    num_tiles = B_pad // tm

    # Cast + (batch-only) pad; fuses inside this jit, no 128-wide feature pad.
    x_p = x.astype(jnp.bfloat16)
    if B_pad != B:
        x_p = jnp.pad(x_p, ((0, B_pad - B), (0, 0)))

    kernel = functools.partial(
        _mlp_kernel, n_rest, float(action_range[0]), float(action_range[1])
    )

    in_specs = [
        pl.BlockSpec((tm, in_dim), lambda i: (i, 0)),   # activations: tiled over batch
        pl.BlockSpec((in_dim, P), lambda i: (0, 0)),    # first-layer weight: resident
        pl.BlockSpec((1, P), lambda i: (0, 0)),         # first-layer bias: resident
    ]
    args = [x_p, w0, b0]
    if n_rest:
        in_specs += [
            pl.BlockSpec((n_rest, P, P), lambda i: (0, 0, 0)),
            pl.BlockSpec((n_rest, 1, P), lambda i: (0, 0, 0)),
        ]
        args += [wr, br]

    out = pl.pallas_call(
        kernel,
        out_shape=jax.ShapeDtypeStruct((B_pad, P), jnp.float32),
        grid=(num_tiles,),
        in_specs=in_specs,
        out_specs=pl.BlockSpec((tm, P), lambda i: (i, 0)),
        compiler_params=pltpu.CompilerParams(
            dimension_semantics=("parallel",),
        ),
    )(*args)

    # Slice stays inside the jit -> fused with the kernel's epilogue.
    return out[:B, :output_dim]


# ----------------------------------------------------------------------------
# Parameter construction (PyTorch-Linear-style init) + spectral norm + padding.
# ----------------------------------------------------------------------------
def _init_linear(key, in_dim, out_dim):
    # Mirrors nn.Linear default init: U(-1/sqrt(in), 1/sqrt(in)) for W and b.
    kw, kb = jax.random.split(key)
    bound = 1.0 / math.sqrt(in_dim)
    w = jax.random.uniform(kw, (out_dim, in_dim), jnp.float32, -bound, bound)
    b = jax.random.uniform(kb, (out_dim,), jnp.float32, -bound, bound)
    return w, b


def _spectral_normalize(w, n_iter=30):
    # Power-iteration estimate of the top singular value.
    # TODO(synk): torch's spectral_norm uses a persistent random-init u with 1
    # iteration per forward; this uses 30 fresh iterations, so values differ slightly.
    u = jnp.ones((w.shape[0],), jnp.float32)
    for _ in range(n_iter):
        v = w.T @ u
        v = v / (jnp.linalg.norm(v) + 1e-12)
        u = w @ v
        u = u / (jnp.linalg.norm(u) + 1e-12)
    sigma = u @ (w @ v)
    return w / sigma


def build_mlp_params(key, input_dim, output_dim, hidden_dims, spectral_norms):
    """Builds kernel-ready params.

    Returns (w0, b0, wr, br, P):
      w0: bf16 (input_dim, P)   -- contraction dim left un-padded
      b0: f32  (1, P)
      wr: bf16 (L-1, P, P) or None
      br: f32  (L-1, 1, P) or None
    where P = max over layer output dims, rounded up to 128 (lane-dense, zero-padded).
    """
    assert len(hidden_dims) == len(spectral_norms)
    dims_in = [input_dim] + list(hidden_dims)
    dims_out = list(hidden_dims) + [output_dim]
    use_sn = list(spectral_norms) + [False]

    raw = []
    for din, dout, sn in zip(dims_in, dims_out, use_sn):
        key, sub = jax.random.split(key)
        w, b = _init_linear(sub, din, dout)  # w: (dout, din) f32
        if sn:
            w = _spectral_normalize(w)
        raw.append((w, b))

    P = max(_round_up(d, 128) for d in dims_out)

    # Layer 0: (input_dim, P), no lane padding on K.
    w0, b0 = raw[0]
    d0_out = dims_out[0]
    w0_p = jnp.zeros((input_dim, P), jnp.float32).at[:, :d0_out].set(w0.T)
    b0_p = jnp.zeros((1, P), jnp.float32).at[0, :d0_out].set(b0)

    n_rest = len(raw) - 1
    if n_rest:
        wr = jnp.zeros((n_rest, P, P), jnp.float32)
        br = jnp.zeros((n_rest, 1, P), jnp.float32)
        for l in range(n_rest):
            w, b = raw[l + 1]
            din, dout = dims_in[l + 1], dims_out[l + 1]
            wr = wr.at[l, :din, :dout].set(w.T)
            br = br.at[l, 0, :dout].set(b)
        wr = wr.astype(jnp.bfloat16)
    else:
        wr, br = None, None

    return w0_p.astype(jnp.bfloat16), b0_p, wr, br, P


# ----------------------------------------------------------------------------
if __name__ == "__main__":
    batch = 8
    input_dim = 16
    hidden_dims = [32, 32]
    spectral_norms = [True, False]
    output_dim = 4
    action_range = (-1.0, 1.0)
    # NOTE: dropout=0.0 (default) -> no Dropout layer in the torch module.

    key = jax.random.PRNGKey(0)
    key, kx = jax.random.split(key)
    x = jax.random.normal(kx, (batch, input_dim), jnp.float32)

    w0, b0, wr, br, P = build_mlp_params(
        key, input_dim, output_dim, hidden_dims, spectral_norms
    )

    out = mlp_pallas(
        x, w0, b0, wr, br, action_range=action_range, output_dim=output_dim
    )
    out = jax.block_until_ready(out)
    assert out.shape == (batch, output_dim)

    # Pure-JAX reference using the same padded bf16 params / f32 accumulation.
    h = x.astype(jnp.bfloat16)
    acc = jnp.dot(h, w0, preferred_element_type=jnp.float32) + b0
    if wr is not None:
        for l in range(wr.shape[0]):
            h = jnp.maximum(acc, 0.0).astype(jnp.bfloat16)
            acc = jnp.dot(h, wr[l], preferred_element_type=jnp.float32) + br[l]
    ref = jnp.clip(acc, action_range[0], action_range[1])[:, :output_dim]

    assert jnp.allclose(out, ref, atol=2e-3, rtol=2e-3), "mismatch vs reference"

    print("KERNEL_OK")
</pallas_src>

<mosaic_0001>
module attributes {stable_mosaic.version = 11 : i64} {
  func.func @_mlp_kernel(%arg0: i32, %arg1: memref<16x16xbf16, #tpu.memory_space<vmem>>, %arg2: memref<16x128xbf16, #tpu.memory_space<vmem>>, %arg3: memref<1x128xf32, #tpu.memory_space<vmem>>, %arg4: memref<2x128x128xbf16, #tpu.memory_space<vmem>>, %arg5: memref<2x1x128xf32, #tpu.memory_space<vmem>>, %arg6: memref<16x128xf32, #tpu.memory_space<vmem>>) attributes {dimension_semantics = [#tpu.dimension_semantics<parallel>], iteration_bounds = array<i64: 1>, scalar_prefetch = 0 : i64, scratch_operands = 0 : i64, tpu.core_type = #tpu.core_type<tc>, window_params = [{transform_indices = @transform_0, window_bounds = array<i64: 16, 16>}, {pipeline_mode = #tpu.pipeline_mode<synchronous>, transform_indices = @transform_1, window_bounds = array<i64: 16, 128>}, {pipeline_mode = #tpu.pipeline_mode<synchronous>, transform_indices = @transform_2, window_bounds = array<i64: 1, 128>}, {pipeline_mode = #tpu.pipeline_mode<synchronous>, transform_indices = @transform_3, window_bounds = array<i64: 2, 128, 128>}, {pipeline_mode = #tpu.pipeline_mode<synchronous>, transform_indices = @transform_4, window_bounds = array<i64: 2, 1, 128>}, {transform_indices = @transform_5, window_bounds = array<i64: 16, 128>}]} {
    %c0 = arith.constant 0 : index
    %c0_0 = arith.constant 0 : index
    %0 = vector.load %arg1[%c0, %c0_0] : memref<16x16xbf16, #tpu.memory_space<vmem>>, vector<16x16xbf16>
    %c0_1 = arith.constant 0 : index
    %c0_2 = arith.constant 0 : index
    %1 = vector.load %arg2[%c0_1, %c0_2] : memref<16x128xbf16, #tpu.memory_space<vmem>>, vector<16x128xbf16>
    %cst = arith.constant dense<0.000000e+00> : vector<16x128xf32>
    %2 = tpu.matmul %0, %1, %cst {dimension_numbers = #tpu.dot_dimension_numbers<[1], [0], [0], [1], [0, 0, 1, 1], [], []>} : vector<16x16xbf16>, vector<16x128xbf16>, vector<16x128xf32> -> vector<16x128xf32>
    %c0_3 = arith.constant 0 : index
    %c0_4 = arith.constant 0 : index
    %3 = vector.load %arg3[%c0_3, %c0_4] : memref<1x128xf32, #tpu.memory_space<vmem>>, vector<1x128xf32>
    %4 = vector.broadcast %3 : vector<1x128xf32> to vector<16x128xf32>
    %5 = arith.addf %2, %4 : vector<16x128xf32>
    %cst_5 = arith.constant 0.000000e+00 : f32
    %6 = vector.broadcast %cst_5 : f32 to vector<16x128xf32>
    %7 = arith.maximumf %5, %6 : vector<16x128xf32>
    %8 = arith.truncf %7 : vector<16x128xf32> to vector<16x128xbf16>
    %c0_6 = arith.constant 0 : index
    %c0_7 = arith.constant 0 : index
    %c0_8 = arith.constant 0 : index
    %9 = vector.load %arg4[%c0_6, %c0_7, %c0_8] : memref<2x128x128xbf16, #tpu.memory_space<vmem>>, vector<1x128x128xbf16>
    %10 = vector.shape_cast %9 : vector<1x128x128xbf16> to vector<128x128xbf16>
    %cst_9 = arith.constant dense<0.000000e+00> : vector<16x128xf32>
    %11 = tpu.matmul %8, %10, %cst_9 {dimension_numbers = #tpu.dot_dimension_numbers<[1], [0], [0], [1], [0, 0, 1, 1], [], []>} : vector<16x128xbf16>, vector<128x128xbf16>, vector<16x128xf32> -> vector<16x128xf32>
    %c0_10 = arith.constant 0 : index
    %c0_11 = arith.constant 0 : index
    %c0_12 = arith.constant 0 : index
    %12 = vector.load %arg5[%c0_10, %c0_11, %c0_12] : memref<2x1x128xf32, #tpu.memory_space<vmem>>, vector<1x1x128xf32>
    %13 = vector.shape_cast %12 : vector<1x1x128xf32> to vector<1x128xf32>
    %14 = vector.broadcast %13 : vector<1x128xf32> to vector<16x128xf32>
    %15 = arith.addf %11, %14 : vector<16x128xf32>
    %cst_13 = arith.constant 0.000000e+00 : f32
    %16 = vector.broadcast %cst_13 : f32 to vector<16x128xf32>
    %17 = arith.maximumf %15, %16 : vector<16x128xf32>
    %18 = arith.truncf %17 : vector<16x128xf32> to vector<16x128xbf16>
    %c1 = arith.constant 1 : index
    %c0_14 = arith.constant 0 : index
    %c0_15 = arith.constant 0 : index
    %19 = vector.load %arg4[%c1, %c0_14, %c0_15] : memref<2x128x128xbf16, #tpu.memory_space<vmem>>, vector<1x128x128xbf16>
    %20 = vector.shape_cast %19 : vector<1x128x128xbf16> to vector<128x128xbf16>
    %cst_16 = arith.constant dense<0.000000e+00> : vector<16x128xf32>
    %21 = tpu.matmul %18, %20, %cst_16 {dimension_numbers = #tpu.dot_dimension_numbers<[1], [0], [0], [1], [0, 0, 1, 1], [], []>} : vector<16x128xbf16>, vector<128x128xbf16>, vector<16x128xf32> -> vector<16x128xf32>
    %c1_17 = arith.constant 1 : index
    %c0_18 = arith.constant 0 : index
    %c0_19 = arith.constant 0 : index
    %22 = vector.load %arg5[%c1_17, %c0_18, %c0_19] : memref<2x1x128xf32, #tpu.memory_space<vmem>>, vector<1x1x128xf32>
    %23 = vector.shape_cast %22 : vector<1x1x128xf32> to vector<1x128xf32>
    %24 = vector.broadcast %23 : vector<1x128xf32> to vector<16x128xf32>
    %25 = arith.addf %21, %24 : vector<16x128xf32>
    %cst_20 = arith.constant -1.000000e+00 : f32
    %cst_21 = arith.constant 1.000000e+00 : f32
    %26 = vector.broadcast %cst_20 : f32 to vector<16x128xf32>
    %27 = arith.maximumf %26, %25 : vector<16x128xf32>
    %28 = vector.broadcast %cst_21 : f32 to vector<16x128xf32>
    %29 = arith.minimumf %28, %27 : vector<16x128xf32>
    %c0_22 = arith.constant 0 : index
    %c0_23 = arith.constant 0 : index
    %30 = vector.load %arg6[%c0_22, %c0_23] : memref<16x128xf32, #tpu.memory_space<vmem>>, vector<16x128xf32>
    tpu.vector_store %arg6[%c0_22, %c0_23], %29 {strides = array<i32>} : memref<16x128xf32, #tpu.memory_space<vmem>>, vector<16x128xf32>,
    return
  }
  func.func @transform_0(%arg0: i32) -> (i32, i32) {
    %c0_i32 = arith.constant 0 : i32
    %c0_i32_0 = arith.constant 0 : i32
    return %arg0, %c0_i32 : i32, i32
  }
  func.func @transform_1(%arg0: i32) -> (i32, i32) {
    %c0_i32 = arith.constant 0 : i32
    %c0_i32_0 = arith.constant 0 : i32
    %c0_i32_1 = arith.constant 0 : i32
    return %c0_i32, %c0_i32_0 : i32, i32
  }
  func.func @transform_2(%arg0: i32) -> (i32, i32) {
    %c0_i32 = arith.constant 0 : i32
    %c0_i32_0 = arith.constant 0 : i32
    %c0_i32_1 = arith.constant 0 : i32
    return %c0_i32, %c0_i32_0 : i32, i32
  }
  func.func @transform_3(%arg0: i32) -> (i32, i32, i32) {
    %c0_i32 = arith.constant 0 : i32
    %c0_i32_0 = arith.constant 0 : i32
    %c0_i32_1 = arith.constant 0 : i32
    %c0_i32_2 = arith.constant 0 : i32
    return %c0_i32, %c0_i32_0, %c0_i32_1 : i32, i32, i32
  }
  func.func @transform_4(%arg0: i32) -> (i32, i32, i32) {
    %c0_i32 = arith.constant 0 : i32
    %c0_i32_0 = arith.constant 0 : i32
    %c0_i32_1 = arith.constant 0 : i32
    %c0_i32_2 = arith.constant 0 : i32
    return %c0_i32, %c0_i32_0, %c0_i32_1 : i32, i32, i32
  }
  func.func @transform_5(%arg0: i32) -> (i32, i32) {
    %c0_i32 = arith.constant 0 : i32
    %c0_i32_0 = arith.constant 0 : i32
    return %arg0, %c0_i32 : i32, i32
  }
}

</mosaic_0001>

<llo_original>
// kernel: mlp_pallas.1
$region0: #{mlp_pallas.1}
  #allocation0 [shape = 'u32[]', space=smem, size = 0x4, offset = 0x4, fixed_abs, tag = 'smem constant byte address 0x4 - core index']
  #allocation1 [shape = 'u32[144,128]{1,0:T(1,128)}', space=vmem, size = 0x12000, scoped, tag = 'internal scratch']
  %s0 = inlined_call_operand.vmem [shape: bf16[16,16], index: 0, kind: input, shape index: {}]
  %s1 = inlined_call_operand.vmem [shape: bf16[16,128], index: 1, kind: input, shape index: {}]
  %s2 = inlined_call_operand.vmem [shape: f32[1,128], index: 2, kind: input, shape index: {}]
  %s3 = inlined_call_operand.hbm [shape: bf16[2,128,128], index: 3, kind: input, shape index: {}]
  %s4 = inlined_call_operand.vmem [shape: f32[2,1,128], index: 4, kind: input, shape index: {}]
  %s5 = inlined_call_operand.vmem [shape: f32[16,128], index: 5, kind: output, shape index: {}]
  %s6 = sld [smem:[#allocation0]]
  $region34: #{mlp_pallas.1} parent=0
    _
  %s8 = ssub.s32 1, %s6
  %s9 = scalar_select 0, %s8, %s6
  $region1: #{mlp_pallas.1} parent=0
    #allocation2 [shape = 'u8[65536]{0}', space=vmem, size = 0x10000, scoped, tag = 'input window, operand 3, single buffered']
    #allocation3 [shape = 's32[1]{0}', space=sflag, size = 0x4, scoped, tag = 'scoped memory for mlp_pallas.1']
    %10 = vsyncpa [#allocation3], 0
    // Predicated region
    $region2: #{mlp_pallas.1} parent=1 // pred_check
      _
    $region3: #{mlp_pallas.1} parent=1 // pred_check_branch
      %12 = sbr.rel (0) target = $region5
    $region4: #{mlp_pallas.1} parent=1 // pred_region
      _
    $region5: #{mlp_pallas.1} parent=1 // pred_fallthru
      _
    // Predicated region
    $region6: #{mlp_pallas.1} parent=1 // pred_check
      _
    $region7: #{mlp_pallas.1} parent=1 // pred_check_branch
      %14 = sbr.rel (0) target = $region9
    $region8: #{mlp_pallas.1} parent=1 // pred_region
      _
    $region9: #{mlp_pallas.1} parent=1 // pred_fallthru
      _
    // Predicated region
    $region10: #{mlp_pallas.1} parent=1 // pred_check
      _
    $region11: #{mlp_pallas.1} parent=1 // pred_check_branch
      %16 = sbr.rel (0) target = $region13
    $region12: #{mlp_pallas.1} parent=1 // pred_region
      _
    $region13: #{mlp_pallas.1} parent=1 // pred_fallthru
      _
    // Predicated region
    $region14: #{mlp_pallas.1} parent=1 // pred_check
      _
    $region15: #{mlp_pallas.1} parent=1 // pred_check_branch
      %18 = sbr.rel (0) target = $region17
    $region16: #{mlp_pallas.1} parent=1 // pred_region
      %s20 = ssub.s32 2048, 2048
      %21 = vsyncadd [#allocation3], %s20
      %s22 = sshll.u32 [#allocation2], 4
      %s23 = int_to_ptr.vmem [resolvable:$true] %s22
      %28 = dma.hbm_to_vmem [thread:$0]  %s3, 2048, %s23, [#allocation3], 64, 64, 4
    $region17: #{mlp_pallas.1} parent=1 // pred_fallthru
      _
    // Predicated region
    $region18: #{mlp_pallas.1} parent=1 // pred_check
      _
    $region19: #{mlp_pallas.1} parent=1 // pred_check_branch
      %30 = sbr.rel (0) target = $region21
    $region20: #{mlp_pallas.1} parent=1 // pred_region
      _
    $region21: #{mlp_pallas.1} parent=1 // pred_fallthru
      _
    // Predicated region
    $region22: #{mlp_pallas.1} parent=1 // pred_check
      _
    $region23: #{mlp_pallas.1} parent=1 // pred_check_branch
      %32 = sbr.rel (0) target = $region25
    $region24: #{mlp_pallas.1} parent=1 // pred_region
      %33 = dma.done [#allocation3], 2048
    $region25: #{mlp_pallas.1} parent=1 // pred_fallthru
      _
    %v35 = vld [vmem:[%s0] sm:$0xf]
    %v36 = vld [vmem:[%s0 + $0x4] sm:$0xf]
    %v37 = vld [vmem:[%s1] sm:$0xf]
    %v38 = vld [vmem:[%s1 + $0x4] sm:$0xf]
    %v39 = vld [vmem:[%s2] sm:$0x1]
    %v41 = vlaneseq
    %v42 = vshrl.u32 %v41, 7
    %v43 = vsub.s32 0, %v42
    %v44 = vrot.slane %v39, %v43
    %v48 = vunpack.c.l.b16 %v35
    %v49 = vunpack.c.l.b16 %v36
    %v50 = vpack.c.b16 %v49, %v48
    %v53 = vunpack.c.l.b16 %v37
    %v54 = vunpack.c.l.b16 %v38
    %v55 = vpack.c.b16 %v54, %v53
    %vm57 = vcmask 130048
    %v59 = vsel %vm57, %v50, 0
    %61 = vmatprep.subr.bf16.mxu0 0
    %62 = vmatpush1.bf16.msra.mxu0 %v55
    %63 = vmatprep.subr.bf16.mxu0 0
    %64 = vmatpush1.bf16.msra.mxu0 0
    %65 = vmatprep.subr.bf16.mxu0 0
    %66 = vmatpush1.bf16.msra.mxu0 0
    %67 = vmatprep.subr.bf16.mxu0 0
    %68 = vmatpush1.bf16.msra.mxu0 0
    %69 = vmatprep.subr.bf16.mxu0 0
    %70 = vmatpush1.bf16.msra.mxu0 0
    %71 = vmatprep.subr.bf16.mxu0 0
    %72 = vmatpush1.bf16.msra.mxu0 0
    %73 = vmatprep.subr.bf16.mxu0 0
    %74 = vmatpush1.bf16.msra.mxu0 0
    %75 = vmatprep.subr.bf16.mxu0 0
    %76 = vmatpush1.bf16.msra.mxu0 0
    %77 = vmatprep.subr.bf16.mxu0 0
    %78 = vmatpush1.bf16.msra.mxu0 0
    %79 = vmatprep.subr.bf16.mxu0 0
    %80 = vmatpush1.bf16.msra.mxu0 0
    %81 = vmatprep.subr.bf16.mxu0 0
    %82 = vmatpush1.bf16.msra.mxu0 0
    %83 = vmatprep.subr.bf16.mxu0 0
    %84 = vmatpush1.bf16.msra.mxu0 0
    %85 = vmatprep.subr.bf16.mxu0 0
    %86 = vmatpush1.bf16.msra.mxu0 0
    %87 = vmatprep.subr.bf16.mxu0 0
    %88 = vmatpush1.bf16.msra.mxu0 0
    %89 = vmatprep.subr.bf16.mxu0 0
    %90 = vmatpush1.bf16.msra.mxu0 0
    %91 = vmatprep.subr.bf16.mxu0 0
    %92 = vmatpush1.bf16.msra.mxu0 0
    %93 = vmatprep.mubr.bf16.mxu0 0
    %94 = vmatmul.mubr.bf16.gmra.mrb[0].mxu0 %v59
    %v95 = vpop.f32.mrb[0].mxu0
    %v96 = vadd.f32 %v44, %v95
    %v97 = vpop.f32.mrb[0].mxu0
    %v98 = vpop.f32.mrb[0].mxu0
    %v99 = vadd.f32 %v44, %v98
    %v100 = vpop.f32.mrb[0].mxu0
    %101 = vdwg.mxu0
    %v102 = vmax.f32 %v96, 0.0
    %v103 = vmax.f32 %v99, 0.0
    %v104 = vpack.c.bf16 %v103, %v102
    %v105 = vld [vmem:[#allocation2] sm:$0xf]
    %v106 = vld [vmem:[#allocation2 + $0x4] sm:$0xf]
    %v107 = vld [vmem:[#allocation2 + $0x8] sm:$0xf]
    %v108 = vld [vmem:[#allocation2 + $0xc] sm:$0xf]
    %v109 = vld [vmem:[#allocation2 + $0x10] sm:$0xf]
    %v110 = vld [vmem:[#allocation2 + $0x14] sm:$0xf]
    %v111 = vld [vmem:[#allocation2 + $0x18] sm:$0xf]
    %v112 = vld [vmem:[#allocation2 + $0x1c] sm:$0xf]
    %v113 = vld [vmem:[#allocation2 + $0x20] sm:$0xf]
    %v114 = vld [vmem:[#allocation2 + $0x24] sm:$0xf]
    %v115 = vld [vmem:[#allocation2 + $0x28] sm:$0xf]
    %v116 = vld [vmem:[#allocation2 + $0x2c] sm:$0xf]
    %v117 = vld [vmem:[#allocation2 + $0x30] sm:$0xf]
    %v118 = vld [vmem:[#allocation2 + $0x34] sm:$0xf]
    %v119 = vld [vmem:[#allocation2 + $0x38] sm:$0xf]
    %v120 = vld [vmem:[#allocation2 + $0x3c] sm:$0xf]
    %v121 = vld [vmem:[%s4] sm:$0x1]
    %v123 = vlaneseq
    %v124 = vshrl.u32 %v123, 7
    %v125 = vsub.s32 0, %v124
    %v126 = vrot.slane %v121, %v125
    %v144 = vunpack.c.l.b16 %v105
    %v145 = vunpack.c.l.b16 %v106
    %v146 = vunpack.c.l.b16 %v107
    %v147 = vunpack.c.l.b16 %v108
    %v148 = vunpack.c.l.b16 %v109
    %v149 = vunpack.c.l.b16 %v110
    %v150 = vunpack.c.l.b16 %v111
    %v151 = vunpack.c.l.b16 %v112
    %v152 = vunpack.c.l.b16 %v113
    %v153 = vunpack.c.l.b16 %v114
    %v154 = vunpack.c.l.b16 %v115
    %v155 = vunpack.c.l.b16 %v116
    %v156 = vunpack.c.l.b16 %v117
    %v157 = vunpack.c.l.b16 %v118
    %v158 = vunpack.c.l.b16 %v119
    %v159 = vunpack.c.l.b16 %v120
    %v160 = vpack.c.b16 %v145, %v144
    %v161 = vpack.c.b16 %v147, %v146
    %v162 = vpack.c.b16 %v149, %v148
    %v163 = vpack.c.b16 %v151, %v150
    %v164 = vpack.c.b16 %v153, %v152
    %v165 = vpack.c.b16 %v155, %v154
    %v166 = vpack.c.b16 %v157, %v156
    %v167 = vpack.c.b16 %v159, %v158
    %176 = vmatprep.subr.bf16.mxu0 0
    %177 = vmatpush1.bf16.msra.mxu0 %v160
    %178 = vmatprep.subr.bf16.mxu0 0
    %179 = vmatpush1.bf16.msra.mxu0 %v161
    %180 = vmatprep.subr.bf16.mxu0 0
    %181 = vmatpush1.bf16.msra.mxu0 %v162
    %182 = vmatprep.subr.bf16.mxu0 0
    %183 = vmatpush1.bf16.msra.mxu0 %v163
    %184 = vmatprep.subr.bf16.mxu0 0
    %185 = vmatpush1.bf16.msra.mxu0 %v164
    %186 = vmatprep.subr.bf16.mxu0 0
    %187 = vmatpush1.bf16.msra.mxu0 %v165
    %188 = vmatprep.subr.bf16.mxu0 0
    %189 = vmatpush1.bf16.msra.mxu0 %v166
    %190 = vmatprep.subr.bf16.mxu0 0
    %191 = vmatpush1.bf16.msra.mxu0 %v167
    %192 = vmatprep.subr.bf16.mxu0 0
    %193 = vmatpush1.bf16.msra.mxu0 0
    %194 = vmatprep.subr.bf16.mxu0 0
    %195 = vmatpush1.bf16.msra.mxu0 0
    %196 = vmatprep.subr.bf16.mxu0 0
    %197 = vmatpush1.bf16.msra.mxu0 0
    %198 = vmatprep.subr.bf16.mxu0 0
    %199 = vmatpush1.bf16.msra.mxu0 0
    %200 = vmatprep.subr.bf16.mxu0 0
    %201 = vmatpush1.bf16.msra.mxu0 0
    %202 = vmatprep.subr.bf16.mxu0 0
    %203 = vmatpush1.bf16.msra.mxu0 0
    %204 = vmatprep.subr.bf16.mxu0 0
    %205 = vmatpush1.bf16.msra.mxu0 0
    %206 = vmatprep.subr.bf16.mxu0 0
    %207 = vmatpush1.bf16.msra.mxu0 0
    %208 = vmatprep.mubr.bf16.mxu0 0
    %209 = vmatmul.mubr.bf16.gmra.mrb[0].mxu0 %v104
    %v210 = vpop.f32.mrb[0].mxu0
    %v211 = vadd.f32 %v126, %v210
    %v212 = vpop.f32.mrb[0].mxu0
    %v213 = vpop.f32.mrb[0].mxu0
    %v214 = vadd.f32 %v126, %v213
    %v215 = vpop.f32.mrb[0].mxu0
    %216 = vdwg.mxu0
    %v217 = vmax.f32 %v211, 0.0
    %v218 = vmax.f32 %v214, 0.0
    %v219 = vpack.c.bf16 %v218, %v217
    %s220 = scalar_lea.vmem [#allocation2], 64
    %v221 = vld [vmem:[%s220] sm:$0xf]
    %v222 = vld [vmem:[%s220 + $0x4] sm:$0xf]
    %v223 = vld [vmem:[%s220 + $0x8] sm:$0xf]
    %v224 = vld [vmem:[%s220 + $0xc] sm:$0xf]
    %v225 = vld [vmem:[%s220 + $0x10] sm:$0xf]
    %v226 = vld [vmem:[%s220 + $0x14] sm:$0xf]
    %v227 = vld [vmem:[%s220 + $0x18] sm:$0xf]
    %v228 = vld [vmem:[%s220 + $0x1c] sm:$0xf]
    %v229 = vld [vmem:[%s220 + $0x20] sm:$0xf]
    %v230 = vld [vmem:[%s220 + $0x24] sm:$0xf]
    %v231 = vld [vmem:[%s220 + $0x28] sm:$0xf]
    %v232 = vld [vmem:[%s220 + $0x2c] sm:$0xf]
    %v233 = vld [vmem:[%s220 + $0x30] sm:$0xf]
    %v234 = vld [vmem:[%s220 + $0x34] sm:$0xf]
    %v235 = vld [vmem:[%s220 + $0x38] sm:$0xf]
    %v236 = vld [vmem:[%s220 + $0x3c] sm:$0xf]
    %s237 = scalar_lea.vmem %s4, 1
    %v238 = vld [vmem:[%s237] sm:$0x1]
    %v240 = vlaneseq
    %v241 = vshrl.u32 %v240, 7
    %v242 = vsub.s32 0, %v241
    %v243 = vrot.slane %v238, %v242
    %v261 = vunpack.c.l.b16 %v221
    %v262 = vunpack.c.l.b16 %v222
    %v263 = vunpack.c.l.b16 %v223
    %v264 = vunpack.c.l.b16 %v224
    %v265 = vunpack.c.l.b16 %v225
    %v266 = vunpack.c.l.b16 %v226
    %v267 = vunpack.c.l.b16 %v227
    %v268 = vunpack.c.l.b16 %v228
    %v269 = vunpack.c.l.b16 %v229
    %v270 = vunpack.c.l.b16 %v230
    %v271 = vunpack.c.l.b16 %v231
    %v272 = vunpack.c.l.b16 %v232
    %v273 = vunpack.c.l.b16 %v233
    %v274 = vunpack.c.l.b16 %v234
    %v275 = vunpack.c.l.b16 %v235
    %v276 = vunpack.c.l.b16 %v236
    %v277 = vpack.c.b16 %v262, %v261
    %v278 = vpack.c.b16 %v264, %v263
    %v279 = vpack.c.b16 %v266, %v265
    %v280 = vpack.c.b16 %v268, %v267
    %v281 = vpack.c.b16 %v270, %v269
    %v282 = vpack.c.b16 %v272, %v271
    %v283 = vpack.c.b16 %v274, %v273
    %v284 = vpack.c.b16 %v276, %v275
    %293 = vmatprep.subr.bf16.mxu0 0
    %294 = vmatpush1.bf16.msra.mxu0 %v277
    %295 = vmatprep.subr.bf16.mxu0 0
    %296 = vmatpush1.bf16.msra.mxu0 %v278
    %297 = vmatprep.subr.bf16.mxu0 0
    %298 = vmatpush1.bf16.msra.mxu0 %v279
    %299 = vmatprep.subr.bf16.mxu0 0
    %300 = vmatpush1.bf16.msra.mxu0 %v280
    %301 = vmatprep.subr.bf16.mxu0 0
    %302 = vmatpush1.bf16.msra.mxu0 %v281
    %303 = vmatprep.subr.bf16.mxu0 0
    %304 = vmatpush1.bf16.msra.mxu0 %v282
    %305 = vmatprep.subr.bf16.mxu0 0
    %306 = vmatpush1.bf16.msra.mxu0 %v283
    %307 = vmatprep.subr.bf16.mxu0 0
    %308 = vmatpush1.bf16.msra.mxu0 %v284
    %309 = vmatprep.subr.bf16.mxu0 0
    %310 = vmatpush1.bf16.msra.mxu0 0
    %311 = vmatprep.subr.bf16.mxu0 0
    %312 = vmatpush1.bf16.msra.mxu0 0
    %313 = vmatprep.subr.bf16.mxu0 0
    %314 = vmatpush1.bf16.msra.mxu0 0
    %315 = vmatprep.subr.bf16.mxu0 0
    %316 = vmatpush1.bf16.msra.mxu0 0
    %317 = vmatprep.subr.bf16.mxu0 0
    %318 = vmatpush1.bf16.msra.mxu0 0
    %319 = vmatprep.subr.bf16.mxu0 0
    %320 = vmatpush1.bf16.msra.mxu0 0
    %321 = vmatprep.subr.bf16.mxu0 0
    %322 = vmatpush1.bf16.msra.mxu0 0
    %323 = vmatprep.subr.bf16.mxu0 0
    %324 = vmatpush1.bf16.msra.mxu0 0
    %325 = vmatprep.mubr.bf16.mxu0 0
    %326 = vmatmul.mubr.bf16.gmra.mrb[0].mxu0 %v219
    %v327 = vpop.f32.mrb[0].mxu0
    %v328 = vadd.f32 %v243, %v327
    %v329 = vpop.f32.mrb[0].mxu0
    %v330 = vpop.f32.mrb[0].mxu0
    %v331 = vadd.f32 %v243, %v330
    %v332 = vpop.f32.mrb[0].mxu0
    %333 = vdwg.mxu0
    %v334 = vmax.f32 %v328, -1.0
    %v335 = vmax.f32 %v331, -1.0
    %v336 = vmin.f32 %v334, 1.0
    %v337 = vmin.f32 %v335, 1.0
    %338 = vst [vmem:[%s5] sm:$0xff] %v336
    %339 = vst [vmem:[%s5 + $0x8] sm:$0xff] %v337
    // Predicated region
    $region26: #{mlp_pallas.1} parent=1 // pred_check
      _
    $region27: #{mlp_pallas.1} parent=1 // pred_check_branch
      %341 = sbr.rel (0) target = $region29
    $region28: #{mlp_pallas.1} parent=1 // pred_region
      _
    $region29: #{mlp_pallas.1} parent=1 // pred_fallthru
      _
    // Predicated region
    $region30: #{mlp_pallas.1} parent=1 // pred_check
      _
    $region31: #{mlp_pallas.1} parent=1 // pred_check_branch
      %343 = sbr.rel (0) target = $region33
    $region32: #{mlp_pallas.1} parent=1 // pred_region
      _
    $region33: #{mlp_pallas.1} parent=1 // pred_fallthru
      _
    %344 = vsyncpa [#allocation3], 1

</llo_original>
